<compile_context>
chip_gen: v6e
topology: v6e:2x2x1
jax: 0.10.0
libtpu: 0.0.40
codegen_flags: <defaults>
</compile_context>

<pallas_src>
import functools

import jax
import jax.numpy as jnp
from jax.experimental import pallas as pl
from jax.experimental.pallas import tpu as pltpu


# ---------------------------------------------------------------------------
# Pallas kernels: tiled matmul + bias + optional fused ReLU
# ---------------------------------------------------------------------------
def _linear_kernel_single(x_ref, w_ref, b_ref, o_ref, *, apply_relu):
    # Single K step: no accumulator scratch, write result directly.
    out = jnp.dot(x_ref[...], w_ref[...], preferred_element_type=jnp.float32)
    out = out + b_ref[...].astype(jnp.float32)
    if apply_relu:
        out = jnp.maximum(out, 0.0)
    o_ref[...] = out.astype(o_ref.dtype)


def _linear_kernel_acc(x_ref, w_ref, b_ref, o_ref, acc_ref, *, apply_relu):
    k = pl.program_id(2)

    @pl.when(k == 0)
    def _():
        acc_ref[...] = jnp.zeros_like(acc_ref)

    acc_ref[...] += jnp.dot(x_ref[...], w_ref[...],
                            preferred_element_type=jnp.float32)

    @pl.when(k == pl.num_programs(2) - 1)
    def _():
        out = acc_ref[...] + b_ref[...].astype(jnp.float32)
        if apply_relu:
            out = jnp.maximum(out, 0.0)
        o_ref[...] = out.astype(o_ref.dtype)


def _round_up(x, m):
    return ((x + m - 1) // m) * m


def _pick_tile(padded, cap, quantum):
    """Largest multiple of `quantum` <= cap that divides `padded` (itself a multiple of quantum)."""
    t = min(padded, max(quantum, (cap // quantum) * quantum))
    t = (t // quantum) * quantum
    while padded % t:
        t -= quantum
    return t


def linear_pallas(x2d, w_t, b, *, apply_relu=False,
                  tm_cap=512, tn_cap=512, tk_cap=1024):
    """y = x2d @ w_t + b (optionally ReLU).  x2d: (M, K), w_t: (K, N), b: (N,).

    Pads M to a multiple of 8 (sublane) and K/N to multiples of 128 (lane) so
    the output stores are lane-dense; slices the padding off afterwards.
    """
    M, K = x2d.shape
    Kw, N = w_t.shape
    assert K == Kw, (K, Kw)
    out_dtype = x2d.dtype

    K_p = _round_up(K, 128)
    N_p = _round_up(N, 128)
    tm = min(_round_up(M, 8), tm_cap)
    M_p = _round_up(M, tm)
    tn = _pick_tile(N_p, tn_cap, 128)
    tk = _pick_tile(K_p, tk_cap, 128)
    n_k = K_p // tk

    x_p = x2d if (M_p, K_p) == (M, K) else jnp.pad(x2d, ((0, M_p - M), (0, K_p - K)))
    w_p = w_t if (K_p, N_p) == (K, N) else jnp.pad(w_t, ((0, K_p - K), (0, N_p - N)))
    b_p = b if N_p == N else jnp.pad(b, (0, N_p - N))
    b2d = b_p.reshape(1, N_p)

    # VMEM budget: double-buffered inputs + double-buffered output (+ acc), f32.
    vmem_est = 4 * (2 * (tm * tk + tk * tn + tn) + 2 * tm * tn
                    + (tm * tn if n_k > 1 else 0))
    assert vmem_est < 24 * 1024 * 1024, vmem_est

    if n_k == 1:
        grid = (M_p // tm, N_p // tn)
        semantics = ("parallel", "parallel")
        kernel = functools.partial(_linear_kernel_single, apply_relu=apply_relu)
        in_specs = [
            pl.BlockSpec((tm, tk), lambda i, j: (i, 0)),
            pl.BlockSpec((tk, tn), lambda i, j: (0, j)),
            pl.BlockSpec((1, tn), lambda i, j: (0, j)),
        ]
        out_specs = pl.BlockSpec((tm, tn), lambda i, j: (i, j))
        scratch = []
    else:
        grid = (M_p // tm, N_p // tn, n_k)
        semantics = ("parallel", "parallel", "arbitrary")
        kernel = functools.partial(_linear_kernel_acc, apply_relu=apply_relu)
        in_specs = [
            pl.BlockSpec((tm, tk), lambda i, j, k: (i, k)),
            pl.BlockSpec((tk, tn), lambda i, j, k: (k, j)),
            pl.BlockSpec((1, tn), lambda i, j, k: (0, j)),
        ]
        out_specs = pl.BlockSpec((tm, tn), lambda i, j, k: (i, j))
        scratch = [pltpu.VMEM((tm, tn), jnp.float32)]

    out_p = pl.pallas_call(
        kernel,
        out_shape=jax.ShapeDtypeStruct((M_p, N_p), out_dtype),
        grid_spec=pltpu.PrefetchScalarGridSpec(
            num_scalar_prefetch=0,
            grid=grid,
            in_specs=in_specs,
            out_specs=out_specs,
            scratch_shapes=scratch,
        ),
        compiler_params=pltpu.CompilerParams(
            dimension_semantics=semantics,
            vmem_limit_bytes=32 * 1024 * 1024,
        ),
    )(x_p, w_p, b2d)

    return out_p[:M, :N]


# ---------------------------------------------------------------------------
# RoIAlign in plain JAX, channels-last (data-dependent gather -> not Pallas)
# ---------------------------------------------------------------------------
_SAMPLING = 2  # fixed sub-sample grid per bin
# TODO(synk): torchvision sampling_ratio=-1 is adaptive (ceil(roi/bin)); static
# shapes force a fixed 2x2 sub-sample grid per bin here.


def _bilinear_sample_nhwc(img, ys, xs):
    """img: (H, W, C); ys/xs: same-shaped float coords -> (*ys.shape, C)."""
    H, W, _ = img.shape
    valid = (ys > -1.0) & (ys < H) & (xs > -1.0) & (xs < W)
    y = jnp.clip(ys, 0.0, H - 1.0)
    x = jnp.clip(xs, 0.0, W - 1.0)
    y0 = jnp.floor(y).astype(jnp.int32)
    x0 = jnp.floor(x).astype(jnp.int32)
    y1 = jnp.minimum(y0 + 1, H - 1)
    x1 = jnp.minimum(x0 + 1, W - 1)
    ly = y - y0.astype(y.dtype)
    lx = x - x0.astype(x.dtype)
    hy = 1.0 - ly
    hx = 1.0 - lx
    # Channels-last gather: each fancy-index pulls a contiguous C-vector.
    v00 = img[y0, x0]
    v01 = img[y0, x1]
    v10 = img[y1, x0]
    v11 = img[y1, x1]
    val = (v00 * (hy * hx)[..., None] + v01 * (hy * lx)[..., None]
           + v10 * (ly * hx)[..., None] + v11 * (ly * lx)[..., None])
    return jnp.where(valid[..., None], val, 0.0)


def _roi_align_single_nhwc(feat_b, boxes_b, ph, pw, spatial_scale, sr):
    """feat_b: (H, W, C); boxes_b: (N, 4) as (x1, y1, x2, y2) -> (N, ph, pw, C)."""
    x1 = boxes_b[:, 0] * spatial_scale
    y1 = boxes_b[:, 1] * spatial_scale
    x2 = boxes_b[:, 2] * spatial_scale
    y2 = boxes_b[:, 3] * spatial_scale
    roi_w = jnp.maximum(x2 - x1, 1.0)
    roi_h = jnp.maximum(y2 - y1, 1.0)
    bin_w = roi_w / pw
    bin_h = roi_h / ph
    sub = (jnp.arange(sr, dtype=jnp.float32) + 0.5) / sr                    # (sr,)
    ys = (y1[:, None, None]
          + (jnp.arange(ph, dtype=jnp.float32)[None, :, None] + sub[None, None, :])
          * bin_h[:, None, None])                                           # (N, ph, sr)
    xs = (x1[:, None, None]
          + (jnp.arange(pw, dtype=jnp.float32)[None, :, None] + sub[None, None, :])
          * bin_w[:, None, None])                                           # (N, pw, sr)
    Nb = ys.shape[0]
    Y = jnp.broadcast_to(ys[:, :, :, None, None], (Nb, ph, sr, pw, sr))
    X = jnp.broadcast_to(xs[:, None, None, :, :], (Nb, ph, sr, pw, sr))
    vals = _bilinear_sample_nhwc(feat_b, Y, X)                              # (N, ph, sr, pw, sr, C)
    return vals.mean(axis=(2, 4))                                           # (N, ph, pw, C)


def roi_align_jax(image_feature_nhwc, boxes, roi_size, spatial_scale):
    ph, pw = roi_size
    return jax.vmap(
        lambda f, bx: _roi_align_single_nhwc(f, bx, ph, pw, spatial_scale, _SAMPLING)
    )(image_feature_nhwc, boxes)                                            # (B, N, ph, pw, C)


# ---------------------------------------------------------------------------
# Parameters / helpers
# ---------------------------------------------------------------------------
def _space_to_depth(image, stride):
    """image: (B, Cin, H, W) NCHW -> patches (B*Hf*Wf, Cin*s*s)."""
    B, Cin, H, W = image.shape
    Hf, Wf = H // stride, W // stride
    p = image.reshape(B, Cin, Hf, stride, Wf, stride)
    p = p.transpose(0, 2, 4, 1, 3, 5)
    return p.reshape(B * Hf * Wf, Cin * stride * stride), (B, Hf, Wf)


def init_image_extractor_params(key, cfg, in_channels):
    """nn.Linear / nn.Conv2d style init: U(-1/sqrt(fan_in), 1/sqrt(fan_in))."""
    stride = int(round(1.0 / cfg["spatial_scale"]))
    output_dim = cfg["output_dim"]
    vis_out_dim = cfg["vis_out_dim"]
    R = cfg["roi_size"][0] * cfg["roi_size"][1]
    params = {}

    fan_in = in_channels * stride * stride
    key, kw, kb = jax.random.split(key, 3)
    bound = 1.0 / fan_in ** 0.5
    params["stem_w_t"] = jax.random.uniform(kw, (fan_in, output_dim), jnp.float32, -bound, bound)
    params["stem_b"] = jax.random.uniform(kb, (output_dim,), jnp.float32, -bound, bound)

    key, kw, kb = jax.random.split(key, 3)
    bound = 1.0 / R ** 0.5
    params["agg_w"] = jax.random.uniform(kw, (1, R), jnp.float32, -bound, bound)  # Linear(R, 1)
    params["agg_b"] = jax.random.uniform(kb, (1,), jnp.float32, -bound, bound)

    key, kw, kb = jax.random.split(key, 3)
    bound = 1.0 / output_dim ** 0.5
    params["proj_w_t"] = jax.random.uniform(kw, (output_dim, vis_out_dim), jnp.float32, -bound, bound)
    params["proj_b"] = jax.random.uniform(kb, (vis_out_dim,), jnp.float32, -bound, bound)
    return params


def _aggregator_as_vector(params, cfg, R):
    """Both aggregators are linear maps over the rh*rw axis -> (weight_vec, bias_scalar)."""
    if cfg["objects_aggregator"] == "pool":            # AdaptiveAvgPool1d(1) == mean
        return jnp.full((R,), 1.0 / R, jnp.float32), jnp.float32(0.0)
    elif cfg["objects_aggregator"] == "linear":        # Linear(R, 1)
        return params["agg_w"][0], params["agg_b"][0]
    raise NotImplementedError("Wrong objects aggregator")


# ---------------------------------------------------------------------------
# Forward (Pallas) and pure-JAX reference
# ---------------------------------------------------------------------------
def image_extractor_forward(params, image, boxes, cfg):
    spatial_scale = cfg["spatial_scale"]
    ph, pw = cfg["roi_size"]
    R = ph * pw
    stride = int(round(1.0 / spatial_scale))
    B, Nb = boxes.shape[0], boxes.shape[1]

    # 1) Feature extractor (channels-last, no transposes).
    # TODO(synk): ResNet(args) backbone definition is not part of the spec; a
    # patchify-conv stem (kernel=stride=1/spatial_scale, fused ReLU) stands in.
    patches, (Bi, Hf, Wf) = _space_to_depth(image, stride)
    feat = linear_pallas(patches, params["stem_w_t"], params["stem_b"], apply_relu=True)
    C = feat.shape[-1]
    image_feature = feat.reshape(Bi, Hf, Wf, C)                            # (B, H', W', C) NHWC

    # 2) RoIAlign (plain JAX; data-dependent gather; C is the contiguous lane axis).
    roi_feats = roi_align_jax(image_feature, boxes, (ph, pw), spatial_scale)  # (B, N, ph, pw, C)
    objects = roi_feats.reshape(B * Nb, R * C)                             # rows = (r, c)

    # 3) aggregator + proj fused into ONE linear map -> one pallas_call.
    #    y_v = sum_{r,c} x[r,c] * w_agg[r] * Wp[c,v] + b_agg * sum_c Wp[c,v] + bp[v]
    w_agg, b_agg = _aggregator_as_vector(params, cfg, R)
    proj_w_t, proj_b = params["proj_w_t"], params["proj_b"]                # (C, V), (V,)
    w_fused = jnp.einsum("r,cv->rcv", w_agg, proj_w_t).reshape(R * C, proj_w_t.shape[1])
    b_fused = b_agg * proj_w_t.sum(axis=0) + proj_b
    out = linear_pallas(objects, w_fused, b_fused, apply_relu=False)
    return out.reshape(B, Nb, -1)


def image_extractor_reference(params, image, boxes, cfg):
    spatial_scale = cfg["spatial_scale"]
    ph, pw = cfg["roi_size"]
    R = ph * pw
    stride = int(round(1.0 / spatial_scale))
    B, Nb = boxes.shape[0], boxes.shape[1]

    patches, (Bi, Hf, Wf) = _space_to_depth(image, stride)
    feat = jnp.maximum(patches @ params["stem_w_t"] + params["stem_b"], 0.0)
    C = feat.shape[-1]
    image_feature = feat.reshape(Bi, Hf, Wf, C)

    roi_feats = roi_align_jax(image_feature, boxes, (ph, pw), spatial_scale)  # (B, N, ph, pw, C)
    obj = roi_feats.reshape(B * Nb, R, C)
    if cfg["objects_aggregator"] == "pool":
        agg = obj.mean(axis=1)
    else:
        agg = jnp.einsum("nrc,r->nc", obj, params["agg_w"][0]) + params["agg_b"][0]
    out = agg @ params["proj_w_t"] + params["proj_b"]
    return out.reshape(B, Nb, -1)


# ---------------------------------------------------------------------------
if __name__ == "__main__":
    cfg = dict(roi_size=(4, 4), spatial_scale=0.25, output_dim=32,
               vis_out_dim=64, objects_aggregator="pool")

    key = jax.random.PRNGKey(0)
    kp, ki, kb1, kb2 = jax.random.split(key, 4)
    params = init_image_extractor_params(kp, cfg, in_channels=3)

    image = jax.random.normal(ki, (2, 3, 32, 32), dtype=jnp.float32)
    # boxes: (B, N, 4) = (x1, y1, x2, y2) inside the 32x32 image
    x1y1 = jax.random.uniform(kb1, (2, 5, 2), jnp.float32, 0.0, 16.0)
    wh = jax.random.uniform(kb2, (2, 5, 2), jnp.float32, 4.0, 14.0)
    boxes = jnp.concatenate([x1y1, x1y1 + wh], axis=-1)

    for agg in ("pool", "linear"):
        cfg["objects_aggregator"] = agg
        out = jax.block_until_ready(image_extractor_forward(params, image, boxes, cfg))
        ref = image_extractor_reference(params, image, boxes, cfg)
        assert out.shape == (2, 5, cfg["vis_out_dim"]), out.shape
        assert jnp.allclose(out, ref, atol=1e-4, rtol=1e-4), f"mismatch vs reference ({agg})"

    # Exercise the multi-K accumulator path of the matmul kernel as well.
    km = jax.random.split(key, 3)
    xa = jax.random.normal(km[0], (64, 384), jnp.float32)
    wa = jax.random.normal(km[1], (384, 96), jnp.float32)
    ba = jax.random.normal(km[2], (96,), jnp.float32)
    ya = jax.block_until_ready(linear_pallas(xa, wa, ba, apply_relu=True, tk_cap=128))
    ra = jnp.maximum(xa @ wa + ba, 0.0)
    assert jnp.allclose(ya, ra, atol=1e-3, rtol=1e-3), "mismatch (multi-K path)"

    print("KERNEL_OK")
</pallas_src>

<mosaic_0001>
module attributes {stable_mosaic.version = 11 : i64} {
  func.func @_linear_kernel_single(%arg0: i32, %arg1: i32, %arg2: memref<128x128xf32, #tpu.memory_space<vmem>>, %arg3: memref<128x128xf32, #tpu.memory_space<vmem>>, %arg4: memref<1x128xf32, #tpu.memory_space<vmem>>, %arg5: memref<128x128xf32, #tpu.memory_space<vmem>>) attributes {dimension_semantics = [#tpu.dimension_semantics<parallel>, #tpu.dimension_semantics<parallel>], iteration_bounds = array<i64: 1, 1>, scalar_prefetch = 0 : i64, scratch_operands = 0 : i64, tpu.core_type = #tpu.core_type<tc>, window_params = [{transform_indices = @transform_0, window_bounds = array<i64: 128, 128>}, {transform_indices = @transform_1, window_bounds = array<i64: 128, 128>}, {transform_indices = @transform_2, window_bounds = array<i64: 1, 128>}, {transform_indices = @transform_3, window_bounds = array<i64: 128, 128>}]} {
    %c0 = arith.constant 0 : index
    %c0_0 = arith.constant 0 : index
    %0 = vector.load %arg2[%c0, %c0_0] : memref<128x128xf32, #tpu.memory_space<vmem>>, vector<128x128xf32>
    %c0_1 = arith.constant 0 : index
    %c0_2 = arith.constant 0 : index
    %1 = vector.load %arg3[%c0_1, %c0_2] : memref<128x128xf32, #tpu.memory_space<vmem>>, vector<128x128xf32>
    %cst = arith.constant dense<0.000000e+00> : vector<128x128xf32>
    %2 = tpu.matmul %0, %1, %cst {dimension_numbers = #tpu.dot_dimension_numbers<[1], [0], [0], [1], [0, 0, 1, 1], [], []>} : vector<128x128xf32>, vector<128x128xf32>, vector<128x128xf32> -> vector<128x128xf32>
    %c0_3 = arith.constant 0 : index
    %c0_4 = arith.constant 0 : index
    %3 = vector.load %arg4[%c0_3, %c0_4] : memref<1x128xf32, #tpu.memory_space<vmem>>, vector<1x128xf32>
    %4 = vector.broadcast %3 : vector<1x128xf32> to vector<128x128xf32>
    %5 = arith.addf %2, %4 : vector<128x128xf32>
    %cst_5 = arith.constant 0.000000e+00 : f32
    %6 = vector.broadcast %cst_5 : f32 to vector<128x128xf32>
    %7 = arith.maximumf %5, %6 : vector<128x128xf32>
    %c0_6 = arith.constant 0 : index
    %c0_7 = arith.constant 0 : index
    %8 = vector.load %arg5[%c0_6, %c0_7] : memref<128x128xf32, #tpu.memory_space<vmem>>, vector<128x128xf32>
    tpu.vector_store %arg5[%c0_6, %c0_7], %7 {strides = array<i32>} : memref<128x128xf32, #tpu.memory_space<vmem>>, vector<128x128xf32>,
    return
  }
  func.func @transform_0(%arg0: i32, %arg1: i32) -> (i32, i32) {
    %c0_i32 = arith.constant 0 : i32
    %c0_i32_0 = arith.constant 0 : i32
    return %arg0, %c0_i32 : i32, i32
  }
  func.func @transform_1(%arg0: i32, %arg1: i32) -> (i32, i32) {
    %c0_i32 = arith.constant 0 : i32
    %c0_i32_0 = arith.constant 0 : i32
    return %c0_i32, %arg1 : i32, i32
  }
  func.func @transform_2(%arg0: i32, %arg1: i32) -> (i32, i32) {
    %c0_i32 = arith.constant 0 : i32
    %c0_i32_0 = arith.constant 0 : i32
    return %c0_i32, %arg1 : i32, i32
  }
  func.func @transform_3(%arg0: i32, %arg1: i32) -> (i32, i32) {
    %c0_i32 = arith.constant 0 : i32
    return %arg0, %arg1 : i32, i32
  }
}

</mosaic_0001>

<llo_original>
// kernel: tpu_custom_call.1
$region0: #{tpu_custom_call.1}
  #allocation0 [shape = 'u32[]', space=smem, size = 0x4, offset = 0x4, fixed_abs, tag = 'smem constant byte address 0x4 - core index']
  #allocation1 [shape = 'u32[144,128]{1,0:T(1,128)}', space=vmem, size = 0x12000, scoped, tag = 'internal scratch']
  %s0 = inlined_call_operand.hbm [shape: f32[128,128], index: 0, kind: input, shape index: {}]
  %s1 = inlined_call_operand.hbm [shape: f32[128,128], index: 1, kind: input, shape index: {}]
  %s2 = inlined_call_operand.vmem [shape: f32[1,128], index: 2, kind: input, shape index: {}]
  %s3 = inlined_call_operand.hbm [shape: f32[128,128], index: 3, kind: output, shape index: {}]
  %s4 = sld [smem:[#allocation0]]
  $region30: #{tpu_custom_call.1} parent=0
    _
  %s6 = ssub.s32 1, %s4
  %s7 = scalar_select 0, %s6, %s4
  $region1: #{tpu_custom_call.1} parent=0
    #allocation2 [shape = 'u8[65536]{0}', space=vmem, size = 0x10000, scoped, tag = 'input window, operand 0, single buffered']
    #allocation3 [shape = 's32[1]{0}', space=sflag, size = 0x4, scoped, tag = 'scoped memory for tpu_custom_call.1']
    #allocation4 [shape = 's32[1]{0}', space=sflag, size = 0x4, scoped, tag = 'scoped memory for tpu_custom_call.1']
    #allocation5 [shape = 'u8[65536]{0}', space=vmem, size = 0x10000, scoped, tag = 'input window, operand 1, single buffered']
    #allocation6 [shape = 's32[1]{0}', space=sflag, size = 0x4, scoped, tag = 'scoped memory for tpu_custom_call.1']
    #allocation7 [shape = 'u8[65536]{0}', space=vmem, size = 0x10000, scoped, tag = 'output window, operand 0, single buffered']
    %8 = vsyncpa [#allocation3], 0
    %9 = vsyncpa [#allocation6], 0
    %10 = vsyncpa [#allocation4], 0
    // Predicated region
    $region2: #{tpu_custom_call.1} parent=1 // pred_check
      _
    $region3: #{tpu_custom_call.1} parent=1 // pred_check_branch
      %12 = sbr.rel (0) target = $region5
    $region4: #{tpu_custom_call.1} parent=1 // pred_region
      %s14 = ssub.s32 2048, 2048
      %15 = vsyncadd [#allocation3], %s14
      %s16 = sshll.u32 [#allocation2], 4
      %s17 = int_to_ptr.vmem [resolvable:$true] %s16
      %22 = dma.hbm_to_vmem [thread:$0]  %s0, 2048, %s17, [#allocation3], 128, 128, 8
    $region5: #{tpu_custom_call.1} parent=1 // pred_fallthru
      _
    // Predicated region
    $region6: #{tpu_custom_call.1} parent=1 // pred_check
      _
    $region7: #{tpu_custom_call.1} parent=1 // pred_check_branch
      %24 = sbr.rel (0) target = $region9
    $region8: #{tpu_custom_call.1} parent=1 // pred_region
      %s26 = ssub.s32 2048, 2048
      %27 = vsyncadd [#allocation6], %s26
      %s28 = sshll.u32 [#allocation5], 4
      %s29 = int_to_ptr.vmem [resolvable:$true] %s28
      %34 = dma.hbm_to_vmem [thread:$0]  %s1, 2048, %s29, [#allocation6], 128, 128, 8
    $region9: #{tpu_custom_call.1} parent=1 // pred_fallthru
      _
    // Predicated region
    $region10: #{tpu_custom_call.1} parent=1 // pred_check
      _
    $region11: #{tpu_custom_call.1} parent=1 // pred_check_branch
      %36 = sbr.rel (0) target = $region13
    $region12: #{tpu_custom_call.1} parent=1 // pred_region
      _
    $region13: #{tpu_custom_call.1} parent=1 // pred_fallthru
      _
    // Predicated region
    $region14: #{tpu_custom_call.1} parent=1 // pred_check
      _
    $region15: #{tpu_custom_call.1} parent=1 // pred_check_branch
      %38 = sbr.rel (0) target = $region17
    $region16: #{tpu_custom_call.1} parent=1 // pred_region
      %39 = dma.done [#allocation3], 2048
    $region17: #{tpu_custom_call.1} parent=1 // pred_fallthru
      _
    // Predicated region
    $region18: #{tpu_custom_call.1} parent=1 // pred_check
      _
    $region19: #{tpu_custom_call.1} parent=1 // pred_check_branch
      %41 = sbr.rel (0) target = $region21
    $region20: #{tpu_custom_call.1} parent=1 // pred_region
      %42 = dma.done [#allocation6], 2048
    $region21: #{tpu_custom_call.1} parent=1 // pred_fallthru
      _
    %v43 = vld [vmem:[#allocation2] sm:$0xff]
    %v44 = vld [vmem:[#allocation2 + $0x8] sm:$0xff]
    %v45 = vld [vmem:[#allocation2 + $0x10] sm:$0xff]
    %v46 = vld [vmem:[#allocation2 + $0x18] sm:$0xff]
    %v47 = vld [vmem:[#allocation2 + $0x20] sm:$0xff]
    %v48 = vld [vmem:[#allocation2 + $0x28] sm:$0xff]
    %v49 = vld [vmem:[#allocation2 + $0x30] sm:$0xff]
    %v50 = vld [vmem:[#allocation2 + $0x38] sm:$0xff]
    %v51 = vld [vmem:[#allocation2 + $0x40] sm:$0xff]
    %v52 = vld [vmem:[#allocation2 + $0x48] sm:$0xff]
    %v53 = vld [vmem:[#allocation2 + $0x50] sm:$0xff]
    %v54 = vld [vmem:[#allocation2 + $0x58] sm:$0xff]
    %v55 = vld [vmem:[#allocation2 + $0x60] sm:$0xff]
    %v56 = vld [vmem:[#allocation2 + $0x68] sm:$0xff]
    %v57 = vld [vmem:[#allocation2 + $0x70] sm:$0xff]
    %v58 = vld [vmem:[#allocation2 + $0x78] sm:$0xff]
    %v59 = vld [vmem:[#allocation5] sm:$0xff]
    %v60 = vld [vmem:[#allocation5 + $0x8] sm:$0xff]
    %v61 = vld [vmem:[#allocation5 + $0x10] sm:$0xff]
    %v62 = vld [vmem:[#allocation5 + $0x18] sm:$0xff]
    %v63 = vld [vmem:[#allocation5 + $0x20] sm:$0xff]
    %v64 = vld [vmem:[#allocation5 + $0x28] sm:$0xff]
    %v65 = vld [vmem:[#allocation5 + $0x30] sm:$0xff]
    %v66 = vld [vmem:[#allocation5 + $0x38] sm:$0xff]
    %v67 = vld [vmem:[#allocation5 + $0x40] sm:$0xff]
    %v68 = vld [vmem:[#allocation5 + $0x48] sm:$0xff]
    %v69 = vld [vmem:[#allocation5 + $0x50] sm:$0xff]
    %v70 = vld [vmem:[#allocation5 + $0x58] sm:$0xff]
    %v71 = vld [vmem:[#allocation5 + $0x60] sm:$0xff]
    %v72 = vld [vmem:[#allocation5 + $0x68] sm:$0xff]
    %v73 = vld [vmem:[#allocation5 + $0x70] sm:$0xff]
    %v74 = vld [vmem:[#allocation5 + $0x78] sm:$0xff]
    %v75 = vld [vmem:[%s2] sm:$0x1]
    %v77 = vlaneseq
    %v78 = vshrl.u32 %v77, 7
    %v79 = vsub.s32 0, %v78
    %v80 = vrot.slane %v75, %v79
    %82 = vmatprep.subr.mxu0 0.0
    %83 = vmatpush1.msra.mxu0 %v74
    %84 = vmatprep.subr.mxu0 0.0
    %85 = vmatpush1.msra.mxu0 %v73
    %86 = vmatprep.subr.mxu0 0.0
    %87 = vmatpush1.msra.mxu0 %v72
    %88 = vmatprep.subr.mxu0 0.0
    %89 = vmatpush1.msra.mxu0 %v71
    %90 = vmatprep.subr.mxu0 0.0
    %91 = vmatpush1.msra.mxu0 %v70
    %92 = vmatprep.subr.mxu0 0.0
    %93 = vmatpush1.msra.mxu0 %v69
    %94 = vmatprep.subr.mxu0 0.0
    %95 = vmatpush1.msra.mxu0 %v68
    %96 = vmatprep.subr.mxu0 0.0
    %97 = vmatpush1.msra.mxu0 %v67
    %98 = vmatprep.subr.mxu0 0.0
    %99 = vmatpush1.msra.mxu0 %v66
    %100 = vmatprep.subr.mxu0 0.0
    %101 = vmatpush1.msra.mxu0 %v65
    %102 = vmatprep.subr.mxu0 0.0
    %103 = vmatpush1.msra.mxu0 %v64
    %104 = vmatprep.subr.mxu0 0.0
    %105 = vmatpush1.msra.mxu0 %v63
    %106 = vmatprep.subr.mxu0 0.0
    %107 = vmatpush1.msra.mxu0 %v62
    %108 = vmatprep.subr.mxu0 0.0
    %109 = vmatpush1.msra.mxu0 %v61
    %110 = vmatprep.subr.mxu0 0.0
    %111 = vmatpush1.msra.mxu0 %v60
    %112 = vmatprep.subr.mxu0 0.0
    %113 = vmatpush1.msra.mxu0 %v59
    %114 = vmatprep.subr.mxu0 0.0
    %115 = vmatpush2.msra.mxu0 0.0
    %116 = vmatprep.subr.mxu0 0.0
    %117 = vmatpush2.msra.mxu0 0.0
    %118 = vmatprep.subr.mxu0 0.0
    %119 = vmatpush2.msra.mxu0 0.0
    %120 = vmatprep.subr.mxu0 0.0
    %121 = vmatpush2.msra.mxu0 0.0
    %122 = vmatprep.subr.mxu0 0.0
    %123 = vmatpush2.msra.mxu0 0.0
    %124 = vmatprep.subr.mxu0 0.0
    %125 = vmatpush2.msra.mxu0 0.0
    %126 = vmatprep.subr.mxu0 0.0
    %127 = vmatpush2.msra.mxu0 0.0
    %128 = vmatprep.subr.mxu0 0.0
    %129 = vmatpush2.msra.mxu0 0.0
    %130 = vmatprep.subr.mxu0 0.0
    %131 = vmatpush2.msra.mxu0 0.0
    %132 = vmatprep.subr.mxu0 0.0
    %133 = vmatpush2.msra.mxu0 0.0
    %134 = vmatprep.subr.mxu0 0.0
    %135 = vmatpush2.msra.mxu0 0.0
    %136 = vmatprep.subr.mxu0 0.0
    %137 = vmatpush2.msra.mxu0 0.0
    %138 = vmatprep.subr.mxu0 0.0
    %139 = vmatpush2.msra.mxu0 0.0
    %140 = vmatprep.subr.mxu0 0.0
    %141 = vmatpush2.msra.mxu0 0.0
    %142 = vmatprep.subr.mxu0 0.0
    %143 = vmatpush2.msra.mxu0 0.0
    %144 = vmatprep.subr.mxu0 0.0
    %145 = vmatpush2.msra.mxu0 0.0
    %146 = vmatprep.mubr.f32.mxu0 0.0
    %147 = vmatmul.mubr.f32.gmra.mxu0 %v43
    %v148 = vpop.f32.mrf.mxu0
    %v149 = vadd.f32 %v80, %v148
    %v150 = vpop.f32.mrf.mxu0
    %151 = vmatprep.mubr.f32.mxu0 0.0
    %152 = vmatmul.mubr.f32.gmra.mxu0 %v44
    %v153 = vpop.f32.mrf.mxu0
    %v154 = vadd.f32 %v80, %v153
    %v155 = vpop.f32.mrf.mxu0
    %156 = vmatprep.mubr.f32.mxu0 0.0
    %157 = vmatmul.mubr.f32.gmra.mxu0 %v45
    %v158 = vpop.f32.mrf.mxu0
    %v159 = vadd.f32 %v80, %v158
    %v160 = vpop.f32.mrf.mxu0
    %161 = vmatprep.mubr.f32.mxu0 0.0
    %162 = vmatmul.mubr.f32.gmra.mxu0 %v46
    %v163 = vpop.f32.mrf.mxu0
    %v164 = vadd.f32 %v80, %v163
    %v165 = vpop.f32.mrf.mxu0
    %166 = vmatprep.mubr.f32.mxu0 0.0
    %167 = vmatmul.mubr.f32.gmra.mxu0 %v47
    %v168 = vpop.f32.mrf.mxu0
    %v169 = vadd.f32 %v80, %v168
    %v170 = vpop.f32.mrf.mxu0
    %171 = vmatprep.mubr.f32.mxu0 0.0
    %172 = vmatmul.mubr.f32.gmra.mxu0 %v48
    %v173 = vpop.f32.mrf.mxu0
    %v174 = vadd.f32 %v80, %v173
    %v175 = vpop.f32.mrf.mxu0
    %176 = vmatprep.mubr.f32.mxu0 0.0
    %177 = vmatmul.mubr.f32.gmra.mxu0 %v49
    %v178 = vpop.f32.mrf.mxu0
    %v179 = vadd.f32 %v80, %v178
    %v180 = vpop.f32.mrf.mxu0
    %181 = vmatprep.mubr.f32.mxu0 0.0
    %182 = vmatmul.mubr.f32.gmra.mxu0 %v50
    %v183 = vpop.f32.mrf.mxu0
    %v184 = vadd.f32 %v80, %v183
    %v185 = vpop.f32.mrf.mxu0
    %186 = vmatprep.mubr.f32.mxu0 0.0
    %187 = vmatmul.mubr.f32.gmra.mxu0 %v51
    %v188 = vpop.f32.mrf.mxu0
    %v189 = vadd.f32 %v80, %v188
    %v190 = vpop.f32.mrf.mxu0
    %191 = vmatprep.mubr.f32.mxu0 0.0
    %192 = vmatmul.mubr.f32.gmra.mxu0 %v52
    %v193 = vpop.f32.mrf.mxu0
    %v194 = vadd.f32 %v80, %v193
    %v195 = vpop.f32.mrf.mxu0
    %196 = vmatprep.mubr.f32.mxu0 0.0
    %197 = vmatmul.mubr.f32.gmra.mxu0 %v53
    %v198 = vpop.f32.mrf.mxu0
    %v199 = vadd.f32 %v80, %v198
    %v200 = vpop.f32.mrf.mxu0
    %201 = vmatprep.mubr.f32.mxu0 0.0
    %202 = vmatmul.mubr.f32.gmra.mxu0 %v54
    %v203 = vpop.f32.mrf.mxu0
    %v204 = vadd.f32 %v80, %v203
    %v205 = vpop.f32.mrf.mxu0
    %206 = vmatprep.mubr.f32.mxu0 0.0
    %207 = vmatmul.mubr.f32.gmra.mxu0 %v55
    %v208 = vpop.f32.mrf.mxu0
    %v209 = vadd.f32 %v80, %v208
    %v210 = vpop.f32.mrf.mxu0
    %211 = vmatprep.mubr.f32.mxu0 0.0
    %212 = vmatmul.mubr.f32.gmra.mxu0 %v56
    %v213 = vpop.f32.mrf.mxu0
    %v214 = vadd.f32 %v80, %v213
    %v215 = vpop.f32.mrf.mxu0
    %216 = vmatprep.mubr.f32.mxu0 0.0
    %217 = vmatmul.mubr.f32.gmra.mxu0 %v57
    %v218 = vpop.f32.mrf.mxu0
    %v219 = vadd.f32 %v80, %v218
    %v220 = vpop.f32.mrf.mxu0
    %221 = vmatprep.mubr.f32.mxu0 0.0
    %222 = vmatmul.mubr.f32.gmra.mxu0 %v58
    %v223 = vpop.f32.mrf.mxu0
    %v224 = vadd.f32 %v80, %v223
    %v225 = vpop.f32.mrf.mxu0
    %226 = vdwg.mxu0
    %v227 = vmax.f32 %v149, 0.0
    %v228 = vmax.f32 %v154, 0.0
    %v229 = vmax.f32 %v159, 0.0
    %v230 = vmax.f32 %v164, 0.0
    %v231 = vmax.f32 %v169, 0.0
    %v232 = vmax.f32 %v174, 0.0
    %v233 = vmax.f32 %v179, 0.0
    %v234 = vmax.f32 %v184, 0.0
    %v235 = vmax.f32 %v189, 0.0
    %v236 = vmax.f32 %v194, 0.0
    %v237 = vmax.f32 %v199, 0.0
    %v238 = vmax.f32 %v204, 0.0
    %v239 = vmax.f32 %v209, 0.0
    %v240 = vmax.f32 %v214, 0.0
    %v241 = vmax.f32 %v219, 0.0
    %v242 = vmax.f32 %v224, 0.0
    %243 = vst [vmem:[#allocation7] sm:$0xff] %v227
    %244 = vst [vmem:[#allocation7 + $0x8] sm:$0xff] %v228
    %245 = vst [vmem:[#allocation7 + $0x10] sm:$0xff] %v229
    %246 = vst [vmem:[#allocation7 + $0x18] sm:$0xff] %v230
    %247 = vst [vmem:[#allocation7 + $0x20] sm:$0xff] %v231
    %248 = vst [vmem:[#allocation7 + $0x28] sm:$0xff] %v232
    %249 = vst [vmem:[#allocation7 + $0x30] sm:$0xff] %v233
    %250 = vst [vmem:[#allocation7 + $0x38] sm:$0xff] %v234
    %251 = vst [vmem:[#allocation7 + $0x40] sm:$0xff] %v235
    %252 = vst [vmem:[#allocation7 + $0x48] sm:$0xff] %v236
    %253 = vst [vmem:[#allocation7 + $0x50] sm:$0xff] %v237
    %254 = vst [vmem:[#allocation7 + $0x58] sm:$0xff] %v238
    %255 = vst [vmem:[#allocation7 + $0x60] sm:$0xff] %v239
    %256 = vst [vmem:[#allocation7 + $0x68] sm:$0xff] %v240
    %257 = vst [vmem:[#allocation7 + $0x70] sm:$0xff] %v241
    %258 = vst [vmem:[#allocation7 + $0x78] sm:$0xff] %v242
    // Predicated region
    $region22: #{tpu_custom_call.1} parent=1 // pred_check
      _
    $region23: #{tpu_custom_call.1} parent=1 // pred_check_branch
      %260 = sbr.rel (0) target = $region25
    $region24: #{tpu_custom_call.1} parent=1 // pred_region
      %s262 = ssub.s32 2048, 2048
      %263 = vsyncadd [#allocation4], %s262
      %s264 = sshll.u32 [#allocation7], 4
      %s265 = int_to_ptr.vmem [resolvable:$true] %s264
      %270 = dma.vmem_to_hbm [thread:$0]  %s265, 2048, %s3, [#allocation4], 128, 128, 8
    $region25: #{tpu_custom_call.1} parent=1 // pred_fallthru
      _
    // Predicated region
    $region26: #{tpu_custom_call.1} parent=1 // pred_check
      _
    $region27: #{tpu_custom_call.1} parent=1 // pred_check_branch
      %272 = sbr.rel (0) target = $region29
    $region28: #{tpu_custom_call.1} parent=1 // pred_region
      %273 = dma.done [#allocation4], 2048
    $region29: #{tpu_custom_call.1} parent=1 // pred_fallthru
      _
    %274 = vsyncpa [#allocation3], 1
    %275 = vsyncpa [#allocation6], 1
    %276 = vsyncpa [#allocation4], 1

</llo_original>
